<compile_context>
chip_gen: v6e
topology: v6e:2x2x1
jax: 0.10.0
libtpu: 0.0.40
codegen_flags: <defaults>
</compile_context>

<pallas_src>
import functools

import jax
import jax.numpy as jnp
from jax.experimental import pallas as pl
from jax.experimental.pallas import tpu as pltpu


def _round_up(x: int, m: int) -> int:
    return ((x + m - 1) // m) * m


def _attr_decoder_kernel(x_ref, w1_ref, b1_ref, w2_ref, b2_ref, o_ref):
    # fc1 on the MXU (bf16 inputs, f32 accumulation)
    h = jnp.dot(x_ref[...], w1_ref[...], preferred_element_type=jnp.float32)
    # bias + ReLU in f32 on the VPU
    h = jnp.maximum(h + b1_ref[...], 0.0)
    # fc2 on the MXU
    y = jnp.dot(h.astype(w2_ref.dtype), w2_ref[...],
                preferred_element_type=jnp.float32)
    o_ref[...] = (y + b2_ref[...]).astype(o_ref.dtype)


def attr_decoder_forward(x, w1, b1, w2, b2, *, block_b: int = 512,
                         compute_dtype=jnp.bfloat16):
    """x: (B, H); w1: (H, M); b1: (1, M); w2: (M, O); b2: (1, O) -> (B, O)."""
    B, H = x.shape
    M = w1.shape[1]
    O = w2.shape[1]
    out_dtype = x.dtype

    LANE = 128
    SUBLANE = 8

    # Pad feature dims to lane multiples (lane-dense loads/stores, aligned MXU K/N).
    Hp = _round_up(H, LANE)
    Mp = _round_up(M, LANE)
    Op = _round_up(O, LANE)

    # Batch tile: up to `block_b` rows (amortizes ~0.35us/grid-step overhead),
    # at least a sublane multiple; pad B so the grid divides exactly.
    TB = min(block_b, _round_up(B, SUBLANE))
    Bp = _round_up(B, TB)

    def pad2(a, rows, cols, dtype):
        return jnp.pad(a, ((0, rows - a.shape[0]), (0, cols - a.shape[1]))
                       ).astype(dtype)

    xp = pad2(x, Bp, Hp, compute_dtype)
    w1p = pad2(w1, Hp, Mp, compute_dtype)
    b1p = pad2(b1, 1, Mp, jnp.float32)
    w2p = pad2(w2, Mp, Op, compute_dtype)
    b2p = pad2(b2, 1, Op, jnp.float32)

    grid = (Bp // TB,)

    flops = 2 * Bp * (Hp * Mp + Mp * Op)
    bytes_accessed = (
        xp.size * xp.dtype.itemsize
        + w1p.size * w1p.dtype.itemsize
        + b1p.size * b1p.dtype.itemsize
        + w2p.size * w2p.dtype.itemsize
        + b2p.size * b2p.dtype.itemsize
        + Bp * Op * jnp.dtype(out_dtype).itemsize
    )

    out_padded = pl.pallas_call(
        _attr_decoder_kernel,
        out_shape=jax.ShapeDtypeStruct((Bp, Op), out_dtype),
        grid=grid,
        in_specs=[
            pl.BlockSpec((TB, Hp), lambda i: (i, 0)),   # x tile: streams with grid
            pl.BlockSpec((Hp, Mp), lambda i: (0, 0)),   # w1: VMEM-resident
            pl.BlockSpec((1, Mp), lambda i: (0, 0)),    # b1: VMEM-resident
            pl.BlockSpec((Mp, Op), lambda i: (0, 0)),   # w2: VMEM-resident
            pl.BlockSpec((1, Op), lambda i: (0, 0)),    # b2: VMEM-resident
        ],
        out_specs=pl.BlockSpec((TB, Op), lambda i: (i, 0)),
        compiler_params=pltpu.CompilerParams(
            dimension_semantics=("parallel",),      # shards batch over v7x's 2 TCs
            vmem_limit_bytes=64 << 20,              # explicit; fits v7x's 64 MiB VMEM
        ),
        cost_estimate=pl.CostEstimate(
            flops=flops, transcendentals=0, bytes_accessed=bytes_accessed),
    )(xp, w1p, b1p, w2p, b2p)

    # Strip batch / lane padding outside the kernel.
    return out_padded[:B, :O]


def init_params(key, hidden_size, mid_size, output_size, dtype=jnp.float32):
    """Deterministic init mimicking nn.Linear's uniform(-1/sqrt(fan_in), 1/sqrt(fan_in))."""
    k1, k2, k3, k4 = jax.random.split(key, 4)
    bound1 = 1.0 / jnp.sqrt(hidden_size)
    bound2 = 1.0 / jnp.sqrt(mid_size)
    # stored as (in, out) == transpose of PyTorch's (out, in) weight
    w1 = jax.random.uniform(k1, (hidden_size, mid_size), dtype, -bound1, bound1)
    b1 = jax.random.uniform(k2, (1, mid_size), dtype, -bound1, bound1)
    w2 = jax.random.uniform(k3, (mid_size, output_size), dtype, -bound2, bound2)
    b2 = jax.random.uniform(k4, (1, output_size), dtype, -bound2, bound2)
    return w1, b1, w2, b2


if __name__ == "__main__":
    # Small shapes consistent with the module's forward.
    # NOTE: at these toy sizes the kernel is launch/DMA-overhead bound; the tiling /
    # padding / bf16 choices above are what make it scale to realistic sizes.
    batch, hidden_size, mid_size, output_size = 8, 32, 64, 16

    key = jax.random.PRNGKey(0)
    kx, kp = jax.random.split(key)
    x = jax.random.normal(kx, (batch, hidden_size), jnp.float32)
    w1, b1, w2, b2 = init_params(kp, hidden_size, mid_size, output_size)

    fwd = jax.jit(functools.partial(attr_decoder_forward, block_b=512))
    out = jax.block_until_ready(fwd(x, w1, b1, w2, b2))

    # Reference in plain JAX (f32). Kernel computes matmuls in bf16 with f32
    # accumulation, so the tolerance is loosened accordingly.
    ref = jnp.maximum(x @ w1 + b1, 0.0) @ w2 + b2
    assert out.shape == (batch, output_size)
    assert out.dtype == x.dtype
    assert jnp.allclose(out, ref, atol=2e-2, rtol=2e-2), (
        float(jnp.max(jnp.abs(out - ref))))

    print("KERNEL_OK")
</pallas_src>

<mosaic_0001>
module attributes {stable_mosaic.version = 11 : i64} {
  func.func @_attr_decoder_kernel(%arg0: i32, %arg1: memref<8x128xbf16, #tpu.memory_space<vmem>>, %arg2: memref<128x128xbf16, #tpu.memory_space<vmem>>, %arg3: memref<1x128xf32, #tpu.memory_space<vmem>>, %arg4: memref<128x128xbf16, #tpu.memory_space<vmem>>, %arg5: memref<1x128xf32, #tpu.memory_space<vmem>>, %arg6: memref<8x128xf32, #tpu.memory_space<vmem>>) attributes {dimension_semantics = [#tpu.dimension_semantics<parallel>], iteration_bounds = array<i64: 1>, scalar_prefetch = 0 : i64, scratch_operands = 0 : i64, tpu.core_type = #tpu.core_type<tc>, window_params = [{transform_indices = @transform_0, window_bounds = array<i64: 8, 128>}, {pipeline_mode = #tpu.pipeline_mode<synchronous>, transform_indices = @transform_1, window_bounds = array<i64: 128, 128>}, {pipeline_mode = #tpu.pipeline_mode<synchronous>, transform_indices = @transform_2, window_bounds = array<i64: 1, 128>}, {pipeline_mode = #tpu.pipeline_mode<synchronous>, transform_indices = @transform_3, window_bounds = array<i64: 128, 128>}, {pipeline_mode = #tpu.pipeline_mode<synchronous>, transform_indices = @transform_4, window_bounds = array<i64: 1, 128>}, {transform_indices = @transform_5, window_bounds = array<i64: 8, 128>}]} {
    %c0 = arith.constant 0 : index
    %c0_0 = arith.constant 0 : index
    %0 = vector.load %arg1[%c0, %c0_0] : memref<8x128xbf16, #tpu.memory_space<vmem>>, vector<8x128xbf16>
    %c0_1 = arith.constant 0 : index
    %c0_2 = arith.constant 0 : index
    %1 = vector.load %arg2[%c0_1, %c0_2] : memref<128x128xbf16, #tpu.memory_space<vmem>>, vector<128x128xbf16>
    %cst = arith.constant dense<0.000000e+00> : vector<8x128xf32>
    %2 = tpu.matmul %0, %1, %cst {dimension_numbers = #tpu.dot_dimension_numbers<[1], [0], [0], [1], [0, 0, 1, 1], [], []>} : vector<8x128xbf16>, vector<128x128xbf16>, vector<8x128xf32> -> vector<8x128xf32>
    %c0_3 = arith.constant 0 : index
    %c0_4 = arith.constant 0 : index
    %3 = vector.load %arg3[%c0_3, %c0_4] : memref<1x128xf32, #tpu.memory_space<vmem>>, vector<1x128xf32>
    %4 = vector.broadcast %3 : vector<1x128xf32> to vector<8x128xf32>
    %5 = arith.addf %2, %4 : vector<8x128xf32>
    %cst_5 = arith.constant 0.000000e+00 : f32
    %6 = vector.broadcast %cst_5 : f32 to vector<8x128xf32>
    %7 = arith.maximumf %5, %6 : vector<8x128xf32>
    %8 = arith.truncf %7 : vector<8x128xf32> to vector<8x128xbf16>
    %c0_6 = arith.constant 0 : index
    %c0_7 = arith.constant 0 : index
    %9 = vector.load %arg4[%c0_6, %c0_7] : memref<128x128xbf16, #tpu.memory_space<vmem>>, vector<128x128xbf16>
    %cst_8 = arith.constant dense<0.000000e+00> : vector<8x128xf32>
    %10 = tpu.matmul %8, %9, %cst_8 {dimension_numbers = #tpu.dot_dimension_numbers<[1], [0], [0], [1], [0, 0, 1, 1], [], []>} : vector<8x128xbf16>, vector<128x128xbf16>, vector<8x128xf32> -> vector<8x128xf32>
    %c0_9 = arith.constant 0 : index
    %c0_10 = arith.constant 0 : index
    %11 = vector.load %arg5[%c0_9, %c0_10] : memref<1x128xf32, #tpu.memory_space<vmem>>, vector<1x128xf32>
    %12 = vector.broadcast %11 : vector<1x128xf32> to vector<8x128xf32>
    %13 = arith.addf %10, %12 : vector<8x128xf32>
    %c0_11 = arith.constant 0 : index
    %c0_12 = arith.constant 0 : index
    %14 = vector.load %arg6[%c0_11, %c0_12] : memref<8x128xf32, #tpu.memory_space<vmem>>, vector<8x128xf32>
    tpu.vector_store %arg6[%c0_11, %c0_12], %13 {strides = array<i32>} : memref<8x128xf32, #tpu.memory_space<vmem>>, vector<8x128xf32>,
    return
  }
  func.func @transform_0(%arg0: i32) -> (i32, i32) {
    %c0_i32 = arith.constant 0 : i32
    %c0_i32_0 = arith.constant 0 : i32
    return %arg0, %c0_i32 : i32, i32
  }
  func.func @transform_1(%arg0: i32) -> (i32, i32) {
    %c0_i32 = arith.constant 0 : i32
    %c0_i32_0 = arith.constant 0 : i32
    %c0_i32_1 = arith.constant 0 : i32
    return %c0_i32, %c0_i32_0 : i32, i32
  }
  func.func @transform_2(%arg0: i32) -> (i32, i32) {
    %c0_i32 = arith.constant 0 : i32
    %c0_i32_0 = arith.constant 0 : i32
    %c0_i32_1 = arith.constant 0 : i32
    return %c0_i32, %c0_i32_0 : i32, i32
  }
  func.func @transform_3(%arg0: i32) -> (i32, i32) {
    %c0_i32 = arith.constant 0 : i32
    %c0_i32_0 = arith.constant 0 : i32
    %c0_i32_1 = arith.constant 0 : i32
    return %c0_i32, %c0_i32_0 : i32, i32
  }
  func.func @transform_4(%arg0: i32) -> (i32, i32) {
    %c0_i32 = arith.constant 0 : i32
    %c0_i32_0 = arith.constant 0 : i32
    %c0_i32_1 = arith.constant 0 : i32
    return %c0_i32, %c0_i32_0 : i32, i32
  }
  func.func @transform_5(%arg0: i32) -> (i32, i32) {
    %c0_i32 = arith.constant 0 : i32
    %c0_i32_0 = arith.constant 0 : i32
    return %arg0, %c0_i32 : i32, i32
  }
}

</mosaic_0001>

<llo_original>
// kernel: attr_decoder_forward.1
$region0: #{attr_decoder_forward.1}
  #allocation0 [shape = 'u32[]', space=smem, size = 0x4, offset = 0x4, fixed_abs, tag = 'smem constant byte address 0x4 - core index']
  #allocation1 [shape = 'u32[144,128]{1,0:T(1,128)}', space=vmem, size = 0x12000, scoped, tag = 'internal scratch']
  %s0 = inlined_call_operand.vmem [shape: bf16[8,128], index: 0, kind: input, shape index: {}]
  %s1 = inlined_call_operand.vmem [shape: bf16[128,128], index: 1, kind: input, shape index: {}]
  %s2 = inlined_call_operand.vmem [shape: f32[1,128], index: 2, kind: input, shape index: {}]
  %s3 = inlined_call_operand.vmem [shape: bf16[128,128], index: 3, kind: input, shape index: {}]
  %s4 = inlined_call_operand.vmem [shape: f32[1,128], index: 4, kind: input, shape index: {}]
  %s5 = inlined_call_operand.hbm [shape: f32[8,128], index: 5, kind: output, shape index: {}]
  %s6 = sld [smem:[#allocation0]]
  $region30: #{attr_decoder_forward.1} parent=0
    _
  %s8 = ssub.s32 1, %s6
  %s9 = scalar_select 0, %s8, %s6
  $region1: #{attr_decoder_forward.1} parent=0
    #allocation2 [shape = 'u8[4096]{0}', space=vmem, size = 0x1000, scoped, tag = 'output window, operand 0, single buffered']
    #allocation3 [shape = 's32[1]{0}', space=sflag, size = 0x4, scoped, tag = 'scoped memory for attr_decoder_forward.1']
    %10 = vsyncpa [#allocation3], 0
    // Predicated region
    $region2: #{attr_decoder_forward.1} parent=1 // pred_check
      _
    $region3: #{attr_decoder_forward.1} parent=1 // pred_check_branch
      %12 = sbr.rel (0) target = $region5
    $region4: #{attr_decoder_forward.1} parent=1 // pred_region
      _
    $region5: #{attr_decoder_forward.1} parent=1 // pred_fallthru
      _
    // Predicated region
    $region6: #{attr_decoder_forward.1} parent=1 // pred_check
      _
    $region7: #{attr_decoder_forward.1} parent=1 // pred_check_branch
      %14 = sbr.rel (0) target = $region9
    $region8: #{attr_decoder_forward.1} parent=1 // pred_region
      _
    $region9: #{attr_decoder_forward.1} parent=1 // pred_fallthru
      _
    // Predicated region
    $region10: #{attr_decoder_forward.1} parent=1 // pred_check
      _
    $region11: #{attr_decoder_forward.1} parent=1 // pred_check_branch
      %16 = sbr.rel (0) target = $region13
    $region12: #{attr_decoder_forward.1} parent=1 // pred_region
      _
    $region13: #{attr_decoder_forward.1} parent=1 // pred_fallthru
      _
    // Predicated region
    $region14: #{attr_decoder_forward.1} parent=1 // pred_check
      _
    $region15: #{attr_decoder_forward.1} parent=1 // pred_check_branch
      %18 = sbr.rel (0) target = $region17
    $region16: #{attr_decoder_forward.1} parent=1 // pred_region
      _
    $region17: #{attr_decoder_forward.1} parent=1 // pred_fallthru
      _
    // Predicated region
    $region18: #{attr_decoder_forward.1} parent=1 // pred_check
      _
    $region19: #{attr_decoder_forward.1} parent=1 // pred_check_branch
      %20 = sbr.rel (0) target = $region21
    $region20: #{attr_decoder_forward.1} parent=1 // pred_region
      _
    $region21: #{attr_decoder_forward.1} parent=1 // pred_fallthru
      _
    %v22 = vld [vmem:[%s0] sm:$0xf]
    %v23 = vld [vmem:[%s1] sm:$0xf]
    %v24 = vld [vmem:[%s1 + $0x4] sm:$0xf]
    %v25 = vld [vmem:[%s1 + $0x8] sm:$0xf]
    %v26 = vld [vmem:[%s1 + $0xc] sm:$0xf]
    %v27 = vld [vmem:[%s1 + $0x10] sm:$0xf]
    %v28 = vld [vmem:[%s1 + $0x14] sm:$0xf]
    %v29 = vld [vmem:[%s1 + $0x18] sm:$0xf]
    %v30 = vld [vmem:[%s1 + $0x1c] sm:$0xf]
    %v31 = vld [vmem:[%s1 + $0x20] sm:$0xf]
    %v32 = vld [vmem:[%s1 + $0x24] sm:$0xf]
    %v33 = vld [vmem:[%s1 + $0x28] sm:$0xf]
    %v34 = vld [vmem:[%s1 + $0x2c] sm:$0xf]
    %v35 = vld [vmem:[%s1 + $0x30] sm:$0xf]
    %v36 = vld [vmem:[%s1 + $0x34] sm:$0xf]
    %v37 = vld [vmem:[%s1 + $0x38] sm:$0xf]
    %v38 = vld [vmem:[%s1 + $0x3c] sm:$0xf]
    %v39 = vld [vmem:[%s2] sm:$0x1]
    %v41 = vlaneseq
    %v42 = vshrl.u32 %v41, 7
    %v43 = vsub.s32 0, %v42
    %v44 = vrot.slane %v39, %v43
    %v62 = vunpack.c.l.b16 %v23
    %v63 = vunpack.c.l.b16 %v24
    %v64 = vunpack.c.l.b16 %v25
    %v65 = vunpack.c.l.b16 %v26
    %v66 = vunpack.c.l.b16 %v27
    %v67 = vunpack.c.l.b16 %v28
    %v68 = vunpack.c.l.b16 %v29
    %v69 = vunpack.c.l.b16 %v30
    %v70 = vunpack.c.l.b16 %v31
    %v71 = vunpack.c.l.b16 %v32
    %v72 = vunpack.c.l.b16 %v33
    %v73 = vunpack.c.l.b16 %v34
    %v74 = vunpack.c.l.b16 %v35
    %v75 = vunpack.c.l.b16 %v36
    %v76 = vunpack.c.l.b16 %v37
    %v77 = vunpack.c.l.b16 %v38
    %v78 = vpack.c.b16 %v63, %v62
    %v79 = vpack.c.b16 %v65, %v64
    %v80 = vpack.c.b16 %v67, %v66
    %v81 = vpack.c.b16 %v69, %v68
    %v82 = vpack.c.b16 %v71, %v70
    %v83 = vpack.c.b16 %v73, %v72
    %v84 = vpack.c.b16 %v75, %v74
    %v85 = vpack.c.b16 %v77, %v76
    %94 = vmatprep.subr.bf16.mxu0 0
    %95 = vmatpush1.bf16.msra.mxu0 %v85
    %96 = vmatprep.subr.bf16.mxu0 0
    %97 = vmatpush1.bf16.msra.mxu0 %v84
    %98 = vmatprep.subr.bf16.mxu0 0
    %99 = vmatpush1.bf16.msra.mxu0 %v83
    %100 = vmatprep.subr.bf16.mxu0 0
    %101 = vmatpush1.bf16.msra.mxu0 %v82
    %102 = vmatprep.subr.bf16.mxu0 0
    %103 = vmatpush1.bf16.msra.mxu0 %v81
    %104 = vmatprep.subr.bf16.mxu0 0
    %105 = vmatpush1.bf16.msra.mxu0 %v80
    %106 = vmatprep.subr.bf16.mxu0 0
    %107 = vmatpush1.bf16.msra.mxu0 %v79
    %108 = vmatprep.subr.bf16.mxu0 0
    %109 = vmatpush1.bf16.msra.mxu0 %v78
    %110 = vmatprep.subr.bf16.mxu0 0
    %111 = vmatpush2.bf16.msra.mxu0 0
    %112 = vmatprep.subr.bf16.mxu0 0
    %113 = vmatpush2.bf16.msra.mxu0 0
    %114 = vmatprep.subr.bf16.mxu0 0
    %115 = vmatpush2.bf16.msra.mxu0 0
    %116 = vmatprep.subr.bf16.mxu0 0
    %117 = vmatpush2.bf16.msra.mxu0 0
    %118 = vmatprep.subr.bf16.mxu0 0
    %119 = vmatpush2.bf16.msra.mxu0 0
    %120 = vmatprep.subr.bf16.mxu0 0
    %121 = vmatpush2.bf16.msra.mxu0 0
    %122 = vmatprep.subr.bf16.mxu0 0
    %123 = vmatpush2.bf16.msra.mxu0 0
    %124 = vmatprep.subr.bf16.mxu0 0
    %125 = vmatpush2.bf16.msra.mxu0 0
    %126 = vmatprep.mubr.bf16.mxu0 0
    %127 = vmatmul.mubr.bf16.gmra.mxu0 %v22
    %v128 = vpop.f32.mrf.mxu0
    %v129 = vadd.f32 %v44, %v128
    %v130 = vpop.f32.mrf.mxu0
    %v131 = vpop.f32.mrf.mxu0
    %v132 = vpop.f32.mrf.mxu0
    %133 = vdwg.mxu0
    %v134 = vmax.f32 %v129, 0.0
    %v135 = vpack.c.bf16 %v134, %v134
    %v136 = vld [vmem:[%s3] sm:$0xf]
    %v137 = vld [vmem:[%s3 + $0x4] sm:$0xf]
    %v138 = vld [vmem:[%s3 + $0x8] sm:$0xf]
    %v139 = vld [vmem:[%s3 + $0xc] sm:$0xf]
    %v140 = vld [vmem:[%s3 + $0x10] sm:$0xf]
    %v141 = vld [vmem:[%s3 + $0x14] sm:$0xf]
    %v142 = vld [vmem:[%s3 + $0x18] sm:$0xf]
    %v143 = vld [vmem:[%s3 + $0x1c] sm:$0xf]
    %v144 = vld [vmem:[%s3 + $0x20] sm:$0xf]
    %v145 = vld [vmem:[%s3 + $0x24] sm:$0xf]
    %v146 = vld [vmem:[%s3 + $0x28] sm:$0xf]
    %v147 = vld [vmem:[%s3 + $0x2c] sm:$0xf]
    %v148 = vld [vmem:[%s3 + $0x30] sm:$0xf]
    %v149 = vld [vmem:[%s3 + $0x34] sm:$0xf]
    %v150 = vld [vmem:[%s3 + $0x38] sm:$0xf]
    %v151 = vld [vmem:[%s3 + $0x3c] sm:$0xf]
    %v152 = vld [vmem:[%s4] sm:$0x1]
    %v154 = vlaneseq
    %v155 = vshrl.u32 %v154, 7
    %v156 = vsub.s32 0, %v155
    %v157 = vrot.slane %v152, %v156
    %v175 = vunpack.c.l.b16 %v136
    %v176 = vunpack.c.l.b16 %v137
    %v177 = vunpack.c.l.b16 %v138
    %v178 = vunpack.c.l.b16 %v139
    %v179 = vunpack.c.l.b16 %v140
    %v180 = vunpack.c.l.b16 %v141
    %v181 = vunpack.c.l.b16 %v142
    %v182 = vunpack.c.l.b16 %v143
    %v183 = vunpack.c.l.b16 %v144
    %v184 = vunpack.c.l.b16 %v145
    %v185 = vunpack.c.l.b16 %v146
    %v186 = vunpack.c.l.b16 %v147
    %v187 = vunpack.c.l.b16 %v148
    %v188 = vunpack.c.l.b16 %v149
    %v189 = vunpack.c.l.b16 %v150
    %v190 = vunpack.c.l.b16 %v151
    %v191 = vpack.c.b16 %v176, %v175
    %v192 = vpack.c.b16 %v178, %v177
    %v193 = vpack.c.b16 %v180, %v179
    %v194 = vpack.c.b16 %v182, %v181
    %v195 = vpack.c.b16 %v184, %v183
    %v196 = vpack.c.b16 %v186, %v185
    %v197 = vpack.c.b16 %v188, %v187
    %v198 = vpack.c.b16 %v190, %v189
    %207 = vmatprep.subr.bf16.mxu0 0
    %208 = vmatpush1.bf16.msra.mxu0 %v198
    %209 = vmatprep.subr.bf16.mxu0 0
    %210 = vmatpush1.bf16.msra.mxu0 %v197
    %211 = vmatprep.subr.bf16.mxu0 0
    %212 = vmatpush1.bf16.msra.mxu0 %v196
    %213 = vmatprep.subr.bf16.mxu0 0
    %214 = vmatpush1.bf16.msra.mxu0 %v195
    %215 = vmatprep.subr.bf16.mxu0 0
    %216 = vmatpush1.bf16.msra.mxu0 %v194
    %217 = vmatprep.subr.bf16.mxu0 0
    %218 = vmatpush1.bf16.msra.mxu0 %v193
    %219 = vmatprep.subr.bf16.mxu0 0
    %220 = vmatpush1.bf16.msra.mxu0 %v192
    %221 = vmatprep.subr.bf16.mxu0 0
    %222 = vmatpush1.bf16.msra.mxu0 %v191
    %223 = vmatprep.subr.bf16.mxu0 0
    %224 = vmatpush2.bf16.msra.mxu0 0
    %225 = vmatprep.subr.bf16.mxu0 0
    %226 = vmatpush2.bf16.msra.mxu0 0
    %227 = vmatprep.subr.bf16.mxu0 0
    %228 = vmatpush2.bf16.msra.mxu0 0
    %229 = vmatprep.subr.bf16.mxu0 0
    %230 = vmatpush2.bf16.msra.mxu0 0
    %231 = vmatprep.subr.bf16.mxu0 0
    %232 = vmatpush2.bf16.msra.mxu0 0
    %233 = vmatprep.subr.bf16.mxu0 0
    %234 = vmatpush2.bf16.msra.mxu0 0
    %235 = vmatprep.subr.bf16.mxu0 0
    %236 = vmatpush2.bf16.msra.mxu0 0
    %237 = vmatprep.subr.bf16.mxu0 0
    %238 = vmatpush2.bf16.msra.mxu0 0
    %239 = vmatprep.mubr.bf16.mxu0 0
    %240 = vmatmul.mubr.bf16.gmra.mxu0 %v135
    %v241 = vpop.f32.mrf.mxu0
    %v242 = vadd.f32 %v157, %v241
    %v243 = vpop.f32.mrf.mxu0
    %v244 = vpop.f32.mrf.mxu0
    %v245 = vpop.f32.mrf.mxu0
    %246 = vdwg.mxu0
    %247 = vst [vmem:[#allocation2] sm:$0xff] %v242
    // Predicated region
    $region22: #{attr_decoder_forward.1} parent=1 // pred_check
      _
    $region23: #{attr_decoder_forward.1} parent=1 // pred_check_branch
      %249 = sbr.rel (0) target = $region25
    $region24: #{attr_decoder_forward.1} parent=1 // pred_region
      %s251 = ssub.s32 128, 128
      %252 = vsyncadd [#allocation3], %s251
      %s254 = sshll.u32 [#allocation2], 4
      %s255 = int_to_ptr.vmem [resolvable:$true] %s254
      %257 = dma.vmem_to_hbm [thread:$0]  %s255, 128, %s5, [#allocation3]
    $region25: #{attr_decoder_forward.1} parent=1 // pred_fallthru
      _
    // Predicated region
    $region26: #{attr_decoder_forward.1} parent=1 // pred_check
      _
    $region27: #{attr_decoder_forward.1} parent=1 // pred_check_branch
      %259 = sbr.rel (0) target = $region29
    $region28: #{attr_decoder_forward.1} parent=1 // pred_region
      %260 = dma.done [#allocation3], 128
    $region29: #{attr_decoder_forward.1} parent=1 // pred_fallthru
      _
    %261 = vsyncpa [#allocation3], 1

</llo_original>
